<compile_context>
chip_gen: v5e
topology: v5e:2x2
jax: 0.10.0
libtpu: 0.0.40
codegen_flags: <defaults>
</compile_context>

<pallas_src>
import functools

import jax
import jax.numpy as jnp
from jax.experimental import pallas as pl
from jax.experimental.pallas import tpu as pltpu

LANE = 128
SUBLANE = 8


def _round_up(x, m):
    return (x + m - 1) // m * m


# ----------------------------------------------------------------------------
# Pallas kernel: encoder heads + projection + folded classifier + Sigmoid
# ----------------------------------------------------------------------------
def fusion_kernel(ehr_pool_ref, ecg_pool_ref, cxr_pool_ref,
                  w_ehr_ref, b_ehr_ref, w_ecg_ref, b_ecg_ref,
                  w_cxr_ref, b_cxr_ref,
                  wp_ref, bp_ref,
                  wc1_ref, wc2_ref, wfold_ref, bcf_ref,
                  preds_ref, ehr_feats_ref, ecg_feats_ref, proj_ref):
    f32 = jnp.float32

    # Encoder Linear heads (stand-in sub-models). Lane-padded (B_pad, 128)
    # outputs; padded lanes are exactly zero because padded weight columns and
    # bias lanes are zero.
    ehr_feats = jnp.dot(ehr_pool_ref[...], w_ehr_ref[...],
                        preferred_element_type=f32) + b_ehr_ref[...]
    ecg_feats = jnp.dot(ecg_pool_ref[...], w_ecg_ref[...],
                        preferred_element_type=f32) + b_ecg_ref[...]
    cxr_feats = jnp.dot(cxr_pool_ref[...], w_cxr_ref[...],
                        preferred_element_type=f32) + b_cxr_ref[...]
    ehr_feats_ref[...] = ehr_feats
    ecg_feats_ref[...] = ecg_feats

    # Projection Linear (the module's `proj_cxr_feats` output).  The classifier
    # below does NOT depend on this result (folded weights), so the two chains
    # overlap on the MXU.
    proj_ref[...] = jnp.dot(cxr_feats, wp_ref[...],
                            preferred_element_type=f32) + bp_ref[...]

    # Fused classifier, concat-free and projection-folded:
    #   logits = ehr@Wc1 + ecg@Wc2 + cxr@(Wp@Wc3) + (bc + bp@Wc3)
    logits = (jnp.dot(ehr_feats, wc1_ref[...], preferred_element_type=f32)
              + jnp.dot(ecg_feats, wc2_ref[...], preferred_element_type=f32)
              + jnp.dot(cxr_feats, wfold_ref[...], preferred_element_type=f32)
              + bcf_ref[...])

    # Sigmoid on the EUP (logistic path), f32 epilogue, lane-dense store.
    preds_ref[...] = jax.nn.sigmoid(logits)


# ----------------------------------------------------------------------------
# One-time parameter prep: lane padding + per-modality split + projection fold
# ----------------------------------------------------------------------------
def prepare_fusion_params(w_ehr, b_ehr, w_ecg, b_ecg, w_cxr, b_cxr,
                          wp, bp, wc, bc):
    """All weights (in, out)-layout. Returns lane-padded kernel params."""
    R, D = wp.shape
    C = bc.shape[1]
    d_pad = _round_up(D, LANE)
    r_pad = _round_up(R, LANE)
    c_pad = _round_up(C, LANE)

    def pad_cols(x, n):
        return jnp.zeros((x.shape[0], n), x.dtype).at[:, :x.shape[1]].set(x)

    def pad_rows(x, n):
        return jnp.zeros((n, x.shape[1]), x.dtype).at[:x.shape[0], :].set(x)

    # Encoder heads: pad output lanes to 128.
    w_ehr_p, b_ehr_p = pad_cols(w_ehr, d_pad), pad_cols(b_ehr, d_pad)
    w_ecg_p, b_ecg_p = pad_cols(w_ecg, d_pad), pad_cols(b_ecg, d_pad)
    w_cxr_p, b_cxr_p = pad_cols(w_cxr, r_pad), pad_cols(b_cxr, r_pad)

    # Projection: (R, D) -> (r_pad, d_pad); zero rows/cols keep padded lanes 0.
    wp_p = pad_cols(pad_rows(wp, r_pad), d_pad)
    bp_p = pad_cols(bp, d_pad)

    # Classifier split per modality; CXR leg folded through the projection.
    wc1, wc2, wc3 = wc[:D], wc[D:2 * D], wc[2 * D:]
    wfold = wp @ wc3          # (R, C)
    bfold = bp @ wc3          # (1, C)
    wc1_p = pad_cols(pad_rows(wc1, d_pad), c_pad)
    wc2_p = pad_cols(pad_rows(wc2, d_pad), c_pad)
    wfold_p = pad_cols(pad_rows(wfold, r_pad), c_pad)
    bcf_p = pad_cols(bc + bfold, c_pad)

    return {"w_ehr": w_ehr_p, "b_ehr": b_ehr_p,
            "w_ecg": w_ecg_p, "b_ecg": b_ecg_p,
            "w_cxr": w_cxr_p, "b_cxr": b_cxr_p,
            "wp": wp_p, "bp": bp_p,
            "wc1": wc1_p, "wc2": wc2_p, "wfold": wfold_p, "bcf": bcf_p,
            "D": D, "R": R, "C": C}


# ----------------------------------------------------------------------------
# Wrapper: pads batch, one grid-less pallas_call, slices padding back off
# ----------------------------------------------------------------------------
def fusion_forward(ehr_pool, ecg_pool, cxr_pool, fp):
    """Runs the whole fusion hot path (encoder heads + projection + classifier)
    in one Pallas kernel. Returns (fused_preds, ehr_feats, ecg_feats, proj)."""
    B = ehr_pool.shape[0]
    D, R, C = fp["D"], fp["R"], fp["C"]
    d_pad, r_pad, c_pad = fp["wp"].shape[1], fp["w_cxr"].shape[1], fp["bcf"].shape[1]
    f_ehr, f_ecg, c_img = ehr_pool.shape[1], ecg_pool.shape[1], cxr_pool.shape[1]

    # Pad batch to a full sublane group (f32 sublane packing is 8).
    b_pad = max(_round_up(B, SUBLANE), SUBLANE)
    extra = b_pad - B
    if extra:
        pad2 = lambda x: jnp.pad(x, ((0, extra), (0, 0)))
        ehr_pool, ecg_pool, cxr_pool = pad2(ehr_pool), pad2(ecg_pool), pad2(cxr_pool)

    vmem_spec = pl.BlockSpec(memory_space=pltpu.MemorySpace.VMEM)

    flops = 2 * b_pad * (f_ehr * d_pad + f_ecg * d_pad + c_img * r_pad
                         + r_pad * d_pad + 2 * d_pad * c_pad + r_pad * c_pad)
    bytes_accessed = 4 * (
        b_pad * (f_ehr + f_ecg + c_img)                   # pooled activations in
        + (f_ehr + f_ecg + 2) * d_pad                     # ehr/ecg heads W+b
        + (c_img + 1) * r_pad                             # cxr head W+b
        + (r_pad + 1) * d_pad                             # projection W+b
        + (2 * d_pad + r_pad + 1) * c_pad                 # classifier Ws + bias
        + b_pad * (c_pad + 3 * d_pad))                    # outputs

    preds_p, ehr_p, ecg_p, proj_p = pl.pallas_call(
        fusion_kernel,
        out_shape=(jax.ShapeDtypeStruct((b_pad, c_pad), jnp.float32),
                   jax.ShapeDtypeStruct((b_pad, d_pad), jnp.float32),
                   jax.ShapeDtypeStruct((b_pad, d_pad), jnp.float32),
                   jax.ShapeDtypeStruct((b_pad, d_pad), jnp.float32)),
        in_specs=[vmem_spec] * 15,
        out_specs=(vmem_spec, vmem_spec, vmem_spec, vmem_spec),
        compiler_params=pltpu.CompilerParams(
            vmem_limit_bytes=4 * 1024 * 1024),
        cost_estimate=pl.CostEstimate(
            flops=flops,
            transcendentals=b_pad * c_pad,
            bytes_accessed=bytes_accessed),
    )(ehr_pool, ecg_pool, cxr_pool,
      fp["w_ehr"], fp["b_ehr"], fp["w_ecg"], fp["b_ecg"],
      fp["w_cxr"], fp["b_cxr"],
      fp["wp"], fp["bp"],
      fp["wc1"], fp["wc2"], fp["wfold"], fp["bcf"])

    return (preds_p[:B, :C], ehr_p[:B, :D], ecg_p[:B, :D], proj_p[:B, :D])


# ----------------------------------------------------------------------------
# Deterministic parameter init (mimics nn.Linear default: U(-1/sqrt(in), ...))
# ----------------------------------------------------------------------------
def _linear_params(key, fan_in, fan_out):
    kw, kb = jax.random.split(key)
    bound = 1.0 / jnp.sqrt(jnp.float32(fan_in))
    w = jax.random.uniform(kw, (fan_in, fan_out), jnp.float32, -bound, bound)
    b = jax.random.uniform(kb, (1, fan_out), jnp.float32, -bound, bound)
    return w, b


# ----------------------------------------------------------------------------
# Stand-in sub-model pooling (plain-JAX glue; deterministic)
# ----------------------------------------------------------------------------
def masked_mean_pool(x, lens):
    # x: (B, T, F); masked mean over valid timesteps -> (B, F)
    B, T, F = x.shape
    mask = (jnp.arange(T)[None, :] < lens[:, None]).astype(jnp.float32)
    return (x * mask[:, :, None]).sum(1) / jnp.maximum(
        lens[:, None].astype(jnp.float32), 1.0)


def gap_pool(img):
    # img: NCHW (B, C, H, W); global average pool -> (B, C)
    return img.mean(axis=(2, 3))


# ----------------------------------------------------------------------------
if __name__ == "__main__":
    key = jax.random.PRNGKey(0)
    keys = jax.random.split(key, 10)

    # Small shapes consistent with the module's forward_fusion
    B = 4            # batch
    T_EHR, F_EHR = 8, 16
    T_ECG, F_ECG = 8, 12
    C_IMG, H, W = 4, 16, 16
    D = 32           # ehr_model.feats_dim == ecg_model.feats_dim (lstm_in)
    R = 64           # cxr_model.feats_dim (resnet_out)
    NUM_CLASSES = 8

    # Raw inputs
    ehr = jax.random.normal(keys[0], (B, T_EHR, F_EHR), jnp.float32)
    ehr_len = jnp.array([8, 5, 7, 3], dtype=jnp.int32)
    ecg = jax.random.normal(keys[1], (B, T_ECG, F_ECG), jnp.float32)
    ecg_len = jnp.array([8, 8, 4, 6], dtype=jnp.int32)
    img = jax.random.normal(keys[2], (B, C_IMG, H, W), jnp.float32)  # NCHW

    # Stand-in sub-model Linear heads (fused into the kernel)
    w_ehr, b_ehr = _linear_params(keys[3], F_EHR, D)
    w_ecg, b_ecg = _linear_params(keys[4], F_ECG, D)
    w_cxr, b_cxr = _linear_params(keys[5], C_IMG, R)

    # Fusion-module parameters:
    #   projection: Linear(resnet_out -> lstm_in)        -> (R, D) transposed
    #   fused_classifier: Linear(3*D -> num_classes)     -> (3D, C) transposed
    wp, bp = _linear_params(keys[6], R, D)
    wc, bc = _linear_params(keys[7], 3 * D, NUM_CLASSES)

    # One-time lane padding / split / projection fold
    fparams = prepare_fusion_params(w_ehr, b_ehr, w_ecg, b_ecg, w_cxr, b_cxr,
                                    wp, bp, wc, bc)

    # Pooling glue (external to the fusion module)
    ehr_pool = masked_mean_pool(ehr, ehr_len)     # (B, F_EHR)
    ecg_pool = masked_mean_pool(ecg, ecg_len)     # (B, F_ECG)
    cxr_pool = gap_pool(img)                      # (B, C_IMG)

    # Pallas fusion hot path (single launch)
    fused_preds, ehr_feats, ecg_feats, proj_cxr_feats = fusion_forward(
        ehr_pool, ecg_pool, cxr_pool, fparams)
    jax.block_until_ready(fused_preds)
    jax.block_until_ready(proj_cxr_feats)

    # Reference (plain JAX): encoder heads, projection, concat, Linear+Sigmoid
    ehr_feats_ref = ehr_pool @ w_ehr + b_ehr
    ecg_feats_ref = ecg_pool @ w_ecg + b_ecg
    cxr_feats_ref = cxr_pool @ w_cxr + b_cxr
    proj_ref = cxr_feats_ref @ wp + bp
    feats_ref = jnp.concatenate([ehr_feats_ref, ecg_feats_ref, proj_ref], axis=1)
    preds_ref = jax.nn.sigmoid(feats_ref @ wc + bc)

    assert fused_preds.shape == (B, NUM_CLASSES)
    assert ehr_feats.shape == (B, D)
    assert ecg_feats.shape == (B, D)
    assert proj_cxr_feats.shape == (B, D)
    assert jnp.allclose(ehr_feats, ehr_feats_ref, atol=1e-5, rtol=1e-4)
    assert jnp.allclose(ecg_feats, ecg_feats_ref, atol=1e-5, rtol=1e-4)
    assert jnp.allclose(proj_cxr_feats, proj_ref, atol=1e-5, rtol=1e-4)
    assert jnp.allclose(fused_preds, preds_ref, atol=1e-5, rtol=1e-4)

    print("KERNEL_OK")
</pallas_src>

<mosaic_0001>
module attributes {stable_mosaic.version = 11 : i64} {
  func.func @fusion_kernel(%arg0: memref<8x16xf32, #tpu.memory_space<vmem>>, %arg1: memref<8x12xf32, #tpu.memory_space<vmem>>, %arg2: memref<8x4xf32, #tpu.memory_space<vmem>>, %arg3: memref<16x128xf32, #tpu.memory_space<vmem>>, %arg4: memref<1x128xf32, #tpu.memory_space<vmem>>, %arg5: memref<12x128xf32, #tpu.memory_space<vmem>>, %arg6: memref<1x128xf32, #tpu.memory_space<vmem>>, %arg7: memref<4x128xf32, #tpu.memory_space<vmem>>, %arg8: memref<1x128xf32, #tpu.memory_space<vmem>>, %arg9: memref<128x128xf32, #tpu.memory_space<vmem>>, %arg10: memref<1x128xf32, #tpu.memory_space<vmem>>, %arg11: memref<128x128xf32, #tpu.memory_space<vmem>>, %arg12: memref<128x128xf32, #tpu.memory_space<vmem>>, %arg13: memref<128x128xf32, #tpu.memory_space<vmem>>, %arg14: memref<1x128xf32, #tpu.memory_space<vmem>>, %arg15: memref<8x128xf32, #tpu.memory_space<vmem>>, %arg16: memref<8x128xf32, #tpu.memory_space<vmem>>, %arg17: memref<8x128xf32, #tpu.memory_space<vmem>>, %arg18: memref<8x128xf32, #tpu.memory_space<vmem>>) attributes {dimension_semantics = [], scalar_prefetch = 0 : i64, scratch_operands = 0 : i64, tpu.core_type = #tpu.core_type<tc>} {
    %c0 = arith.constant 0 : index
    %c0_0 = arith.constant 0 : index
    %0 = vector.load %arg0[%c0, %c0_0] : memref<8x16xf32, #tpu.memory_space<vmem>>, vector<8x16xf32>
    %c0_1 = arith.constant 0 : index
    %c0_2 = arith.constant 0 : index
    %1 = vector.load %arg3[%c0_1, %c0_2] : memref<16x128xf32, #tpu.memory_space<vmem>>, vector<16x128xf32>
    %cst = arith.constant dense<0.000000e+00> : vector<8x128xf32>
    %2 = tpu.matmul %0, %1, %cst {dimension_numbers = #tpu.dot_dimension_numbers<[1], [0], [0], [1], [0, 0, 1, 1], [], []>} : vector<8x16xf32>, vector<16x128xf32>, vector<8x128xf32> -> vector<8x128xf32>
    %c0_3 = arith.constant 0 : index
    %c0_4 = arith.constant 0 : index
    %3 = vector.load %arg4[%c0_3, %c0_4] : memref<1x128xf32, #tpu.memory_space<vmem>>, vector<1x128xf32>
    %4 = vector.broadcast %3 : vector<1x128xf32> to vector<8x128xf32>
    %5 = arith.addf %2, %4 : vector<8x128xf32>
    %c0_5 = arith.constant 0 : index
    %c0_6 = arith.constant 0 : index
    %6 = vector.load %arg1[%c0_5, %c0_6] : memref<8x12xf32, #tpu.memory_space<vmem>>, vector<8x12xf32>
    %c0_7 = arith.constant 0 : index
    %c0_8 = arith.constant 0 : index
    %7 = vector.load %arg5[%c0_7, %c0_8] : memref<12x128xf32, #tpu.memory_space<vmem>>, vector<12x128xf32>
    %cst_9 = arith.constant dense<0.000000e+00> : vector<8x128xf32>
    %8 = tpu.matmul %6, %7, %cst_9 {dimension_numbers = #tpu.dot_dimension_numbers<[1], [0], [0], [1], [0, 0, 1, 1], [], []>} : vector<8x12xf32>, vector<12x128xf32>, vector<8x128xf32> -> vector<8x128xf32>
    %c0_10 = arith.constant 0 : index
    %c0_11 = arith.constant 0 : index
    %9 = vector.load %arg6[%c0_10, %c0_11] : memref<1x128xf32, #tpu.memory_space<vmem>>, vector<1x128xf32>
    %10 = vector.broadcast %9 : vector<1x128xf32> to vector<8x128xf32>
    %11 = arith.addf %8, %10 : vector<8x128xf32>
    %c0_12 = arith.constant 0 : index
    %c0_13 = arith.constant 0 : index
    %12 = vector.load %arg2[%c0_12, %c0_13] : memref<8x4xf32, #tpu.memory_space<vmem>>, vector<8x4xf32>
    %c0_14 = arith.constant 0 : index
    %c0_15 = arith.constant 0 : index
    %13 = vector.load %arg7[%c0_14, %c0_15] : memref<4x128xf32, #tpu.memory_space<vmem>>, vector<4x128xf32>
    %cst_16 = arith.constant dense<0.000000e+00> : vector<8x128xf32>
    %14 = tpu.matmul %12, %13, %cst_16 {dimension_numbers = #tpu.dot_dimension_numbers<[1], [0], [0], [1], [0, 0, 1, 1], [], []>} : vector<8x4xf32>, vector<4x128xf32>, vector<8x128xf32> -> vector<8x128xf32>
    %c0_17 = arith.constant 0 : index
    %c0_18 = arith.constant 0 : index
    %15 = vector.load %arg8[%c0_17, %c0_18] : memref<1x128xf32, #tpu.memory_space<vmem>>, vector<1x128xf32>
    %16 = vector.broadcast %15 : vector<1x128xf32> to vector<8x128xf32>
    %17 = arith.addf %14, %16 : vector<8x128xf32>
    %c0_19 = arith.constant 0 : index
    %c0_20 = arith.constant 0 : index
    %18 = vector.load %arg16[%c0_19, %c0_20] : memref<8x128xf32, #tpu.memory_space<vmem>>, vector<8x128xf32>
    tpu.vector_store %arg16[%c0_19, %c0_20], %5 {strides = array<i32>} : memref<8x128xf32, #tpu.memory_space<vmem>>, vector<8x128xf32>,
    %c0_21 = arith.constant 0 : index
    %c0_22 = arith.constant 0 : index
    %19 = vector.load %arg17[%c0_21, %c0_22] : memref<8x128xf32, #tpu.memory_space<vmem>>, vector<8x128xf32>
    tpu.vector_store %arg17[%c0_21, %c0_22], %11 {strides = array<i32>} : memref<8x128xf32, #tpu.memory_space<vmem>>, vector<8x128xf32>,
    %c0_23 = arith.constant 0 : index
    %c0_24 = arith.constant 0 : index
    %20 = vector.load %arg9[%c0_23, %c0_24] : memref<128x128xf32, #tpu.memory_space<vmem>>, vector<128x128xf32>
    %cst_25 = arith.constant dense<0.000000e+00> : vector<8x128xf32>
    %21 = tpu.matmul %17, %20, %cst_25 {dimension_numbers = #tpu.dot_dimension_numbers<[1], [0], [0], [1], [0, 0, 1, 1], [], []>} : vector<8x128xf32>, vector<128x128xf32>, vector<8x128xf32> -> vector<8x128xf32>
    %c0_26 = arith.constant 0 : index
    %c0_27 = arith.constant 0 : index
    %22 = vector.load %arg10[%c0_26, %c0_27] : memref<1x128xf32, #tpu.memory_space<vmem>>, vector<1x128xf32>
    %23 = vector.broadcast %22 : vector<1x128xf32> to vector<8x128xf32>
    %24 = arith.addf %21, %23 : vector<8x128xf32>
    %c0_28 = arith.constant 0 : index
    %c0_29 = arith.constant 0 : index
    %25 = vector.load %arg18[%c0_28, %c0_29] : memref<8x128xf32, #tpu.memory_space<vmem>>, vector<8x128xf32>
    tpu.vector_store %arg18[%c0_28, %c0_29], %24 {strides = array<i32>} : memref<8x128xf32, #tpu.memory_space<vmem>>, vector<8x128xf32>,
    %c0_30 = arith.constant 0 : index
    %c0_31 = arith.constant 0 : index
    %26 = vector.load %arg11[%c0_30, %c0_31] : memref<128x128xf32, #tpu.memory_space<vmem>>, vector<128x128xf32>
    %cst_32 = arith.constant dense<0.000000e+00> : vector<8x128xf32>
    %27 = tpu.matmul %5, %26, %cst_32 {dimension_numbers = #tpu.dot_dimension_numbers<[1], [0], [0], [1], [0, 0, 1, 1], [], []>} : vector<8x128xf32>, vector<128x128xf32>, vector<8x128xf32> -> vector<8x128xf32>
    %c0_33 = arith.constant 0 : index
    %c0_34 = arith.constant 0 : index
    %28 = vector.load %arg12[%c0_33, %c0_34] : memref<128x128xf32, #tpu.memory_space<vmem>>, vector<128x128xf32>
    %cst_35 = arith.constant dense<0.000000e+00> : vector<8x128xf32>
    %29 = tpu.matmul %11, %28, %cst_35 {dimension_numbers = #tpu.dot_dimension_numbers<[1], [0], [0], [1], [0, 0, 1, 1], [], []>} : vector<8x128xf32>, vector<128x128xf32>, vector<8x128xf32> -> vector<8x128xf32>
    %30 = arith.addf %27, %29 : vector<8x128xf32>
    %c0_36 = arith.constant 0 : index
    %c0_37 = arith.constant 0 : index
    %31 = vector.load %arg13[%c0_36, %c0_37] : memref<128x128xf32, #tpu.memory_space<vmem>>, vector<128x128xf32>
    %cst_38 = arith.constant dense<0.000000e+00> : vector<8x128xf32>
    %32 = tpu.matmul %17, %31, %cst_38 {dimension_numbers = #tpu.dot_dimension_numbers<[1], [0], [0], [1], [0, 0, 1, 1], [], []>} : vector<8x128xf32>, vector<128x128xf32>, vector<8x128xf32> -> vector<8x128xf32>
    %33 = arith.addf %30, %32 : vector<8x128xf32>
    %c0_39 = arith.constant 0 : index
    %c0_40 = arith.constant 0 : index
    %34 = vector.load %arg14[%c0_39, %c0_40] : memref<1x128xf32, #tpu.memory_space<vmem>>, vector<1x128xf32>
    %35 = vector.broadcast %34 : vector<1x128xf32> to vector<8x128xf32>
    %36 = arith.addf %33, %35 : vector<8x128xf32>
    %37 = arith.negf %36 : vector<8x128xf32>
    %38 = math.exp %37 : vector<8x128xf32>
    %cst_41 = arith.constant 1.000000e+00 : f32
    %39 = vector.broadcast %cst_41 : f32 to vector<8x128xf32>
    %40 = arith.addf %39, %38 : vector<8x128xf32>
    %41 = arith.divf %39, %40 : vector<8x128xf32>
    %c0_42 = arith.constant 0 : index
    %c0_43 = arith.constant 0 : index
    %42 = vector.load %arg15[%c0_42, %c0_43] : memref<8x128xf32, #tpu.memory_space<vmem>>, vector<8x128xf32>
    tpu.vector_store %arg15[%c0_42, %c0_43], %41 {strides = array<i32>} : memref<8x128xf32, #tpu.memory_space<vmem>>, vector<8x128xf32>,
    return
  }
}

</mosaic_0001>

<llo_original>
// kernel: tpu_custom_call.1
$region0: #{tpu_custom_call.1}
  #allocation0 [shape = 'u32[]', space=smem, size = 0x4, offset = 0x4, fixed_abs, tag = 'smem constant byte address 0x4 - core index']
  #allocation1 [shape = 'u32[72,128]{1,0:T(1,128)}', space=vmem, size = 0x9000, scoped, tag = 'internal scratch']
  %s0 = inlined_call_operand.hbm [shape: f32[8,16], index: 0, kind: input, shape index: {}]
  %s1 = inlined_call_operand.hbm [shape: f32[8,12], index: 1, kind: input, shape index: {}]
  %s2 = inlined_call_operand.vmem [shape: f32[8,4], index: 2, kind: input, shape index: {}]
  %s3 = inlined_call_operand.hbm [shape: f32[16,128], index: 3, kind: input, shape index: {}]
  %s4 = inlined_call_operand.hbm [shape: f32[1,128], index: 4, kind: input, shape index: {}]
  %s5 = inlined_call_operand.vmem [shape: f32[12,128], index: 5, kind: input, shape index: {}]
  %s6 = inlined_call_operand.vmem [shape: f32[1,128], index: 6, kind: input, shape index: {}]
  %s7 = inlined_call_operand.hbm [shape: f32[4,128], index: 7, kind: input, shape index: {}]
  %s8 = inlined_call_operand.vmem [shape: f32[1,128], index: 8, kind: input, shape index: {}]
  %s9 = inlined_call_operand.hbm [shape: f32[128,128], index: 9, kind: input, shape index: {}]
  %s10 = inlined_call_operand.vmem [shape: f32[1,128], index: 10, kind: input, shape index: {}]
  %s11 = inlined_call_operand.hbm [shape: f32[128,128], index: 11, kind: input, shape index: {}]
  %s12 = inlined_call_operand.hbm [shape: f32[128,128], index: 12, kind: input, shape index: {}]
  %s13 = inlined_call_operand.hbm [shape: f32[128,128], index: 13, kind: input, shape index: {}]
  %s14 = inlined_call_operand.vmem [shape: f32[1,128], index: 14, kind: input, shape index: {}]
  %s15 = inlined_call_operand.hbm [shape: f32[8,128], index: 15, kind: output, shape index: {0}]
  %s16 = inlined_call_operand.hbm [shape: f32[8,128], index: 16, kind: output, shape index: {1}]
  %s17 = inlined_call_operand.hbm [shape: f32[8,128], index: 17, kind: output, shape index: {2}]
  %s18 = inlined_call_operand.hbm [shape: f32[8,128], index: 18, kind: output, shape index: {3}]
  %19 = xla_tuple %s15, %s16, %s17, %s18
  %s20 = sld [smem:[#allocation0]]
  $region130: #{tpu_custom_call.1} parent=0
    _
  %s22 = ssub.s32 1, %s20
  %s23 = scalar_select 0, %s22, %s20
  $region1: #{tpu_custom_call.1} parent=0
    #allocation2 [shape = 'u8[4096]{0}', space=vmem, size = 0x1000, scoped, tag = 'input window, operand 0, single buffered']
    #allocation3 [shape = 's32[1]{0}', space=sflag, size = 0x4, scoped, tag = 'scoped memory for tpu_custom_call.1']
    #allocation4 [shape = 's32[1]{0}', space=sflag, size = 0x4, scoped, tag = 'scoped memory for tpu_custom_call.1']
    #allocation5 [shape = 'u8[4096]{0}', space=vmem, size = 0x1000, scoped, tag = 'input window, operand 1, single buffered']
    #allocation6 [shape = 's32[1]{0}', space=sflag, size = 0x4, scoped, tag = 'scoped memory for tpu_custom_call.1']
    #allocation7 [shape = 'u8[8192]{0}', space=vmem, size = 0x2000, scoped, tag = 'input window, operand 3, single buffered']
    #allocation8 [shape = 'u8[512]{0}', space=vmem, size = 0x400, scoped, tag = 'input window, operand 4, single buffered']
    #allocation9 [shape = 's32[1]{0}', space=sflag, size = 0x4, scoped, tag = 'scoped memory for tpu_custom_call.1']
    #allocation10 [shape = 'u8[2048]{0}', space=vmem, size = 0x800, scoped, tag = 'input window, operand 7, single buffered']
    #allocation11 [shape = 'u8[65536]{0}', space=vmem, size = 0x10000, scoped, tag = 'input window, operand 9, single buffered']
    #allocation12 [shape = 's32[1]{0}', space=sflag, size = 0x4, scoped, tag = 'scoped memory for tpu_custom_call.1']
    #allocation13 [shape = 'u8[65536]{0}', space=vmem, size = 0x10000, scoped, tag = 'input window, operand 11, single buffered']
    #allocation14 [shape = 'u8[65536]{0}', space=vmem, size = 0x10000, scoped, tag = 'input window, operand 12, single buffered']
    #allocation15 [shape = 's32[1]{0}', space=sflag, size = 0x4, scoped, tag = 'scoped memory for tpu_custom_call.1']
    #allocation16 [shape = 'u8[65536]{0}', space=vmem, size = 0x10000, scoped, tag = 'input window, operand 13, single buffered']
    #allocation17 [shape = 'u8[4096]{0}', space=vmem, size = 0x1000, scoped, tag = 'output window, operand 0, single buffered']
    #allocation18 [shape = 'u8[4096]{0}', space=vmem, size = 0x1000, scoped, tag = 'output window, operand 1, single buffered']
    #allocation19 [shape = 's32[1]{0}', space=sflag, size = 0x4, scoped, tag = 'scoped memory for tpu_custom_call.1']
    #allocation20 [shape = 'u8[4096]{0}', space=vmem, size = 0x1000, scoped, tag = 'output window, operand 2, single buffered']
    #allocation21 [shape = 'u8[4096]{0}', space=vmem, size = 0x1000, scoped, tag = 'output window, operand 3, single buffered']
    #allocation22 [shape = 's32[1]{0}', space=sflag, size = 0x4, scoped, tag = 'scoped memory for tpu_custom_call.1']
    %24 = vsyncpa [#allocation3], 0
    %25 = vsyncpa [#allocation6], 0
    %26 = vsyncpa [#allocation9], 0
    %27 = vsyncpa [#allocation12], 0
    %28 = vsyncpa [#allocation15], 0
    %29 = vsyncpa [#allocation4], 0
    %30 = vsyncpa [#allocation19], 0
    %31 = vsyncpa [#allocation22], 0
    // Predicated region
    $region2: #{tpu_custom_call.1} parent=1 // pred_check
      _
    $region3: #{tpu_custom_call.1} parent=1 // pred_check_branch
      %33 = sbr.rel (0) target = $region5
    $region4: #{tpu_custom_call.1} parent=1 // pred_region
      %35 = vsyncadd [#allocation3], 0
      %s37 = sshll.u32 %s0, 4
      %s38 = int_to_ptr.hbm [resolvable:$true] %s37
      %s39 = sshll.u32 [#allocation2], 4
      %s40 = int_to_ptr.vmem [resolvable:$true] %s39
      %42 = dma.hbm_to_vmem [thread:$0]  %s38, 128, %s40, [#allocation3]
    $region5: #{tpu_custom_call.1} parent=1 // pred_fallthru
      _
    // Predicated region
    $region6: #{tpu_custom_call.1} parent=1 // pred_check
      _
    $region7: #{tpu_custom_call.1} parent=1 // pred_check_branch
      %44 = sbr.rel (0) target = $region9
    $region8: #{tpu_custom_call.1} parent=1 // pred_region
      %46 = vsyncadd [#allocation6], 0
      %s48 = sshll.u32 %s1, 4
      %s49 = int_to_ptr.hbm [resolvable:$true] %s48
      %s50 = sshll.u32 [#allocation5], 4
      %s51 = int_to_ptr.vmem [resolvable:$true] %s50
      %53 = dma.hbm_to_vmem [thread:$0]  %s49, 128, %s51, [#allocation6]
    $region9: #{tpu_custom_call.1} parent=1 // pred_fallthru
      _
    // Predicated region
    $region10: #{tpu_custom_call.1} parent=1 // pred_check
      _
    $region11: #{tpu_custom_call.1} parent=1 // pred_check_branch
      %55 = sbr.rel (0) target = $region13
    $region12: #{tpu_custom_call.1} parent=1 // pred_region
      _
    $region13: #{tpu_custom_call.1} parent=1 // pred_fallthru
      _
    // Predicated region
    $region14: #{tpu_custom_call.1} parent=1 // pred_check
      _
    $region15: #{tpu_custom_call.1} parent=1 // pred_check_branch
      %57 = sbr.rel (0) target = $region17
    $region16: #{tpu_custom_call.1} parent=1 // pred_region
      %59 = vsyncadd [#allocation6], 0
      %s60 = sshll.u32 %s3, 4
      %s61 = int_to_ptr.hbm [resolvable:$true] %s60
      %s62 = sshll.u32 [#allocation7], 4
      %s63 = int_to_ptr.vmem [resolvable:$true] %s62
      %68 = dma.hbm_to_vmem [thread:$0]  %s61, 256, %s63, [#allocation6], 128, 128, 8
    $region17: #{tpu_custom_call.1} parent=1 // pred_fallthru
      _
    // Predicated region
    $region18: #{tpu_custom_call.1} parent=1 // pred_check
      _
    $region19: #{tpu_custom_call.1} parent=1 // pred_check_branch
      %70 = sbr.rel (0) target = $region21
    $region20: #{tpu_custom_call.1} parent=1 // pred_region
      %72 = vsyncadd [#allocation9], 0
      %s74 = sshll.u32 %s4, 4
      %s75 = int_to_ptr.hbm [resolvable:$true] %s74
      %s76 = sshll.u32 [#allocation8], 4
      %s77 = int_to_ptr.vmem [resolvable:$true] %s76
      %79 = dma.hbm_to_vmem [thread:$0]  %s75, 16, %s77, [#allocation9]
    $region21: #{tpu_custom_call.1} parent=1 // pred_fallthru
      _
    // Predicated region
    $region22: #{tpu_custom_call.1} parent=1 // pred_check
      _
    $region23: #{tpu_custom_call.1} parent=1 // pred_check_branch
      %81 = sbr.rel (0) target = $region25
    $region24: #{tpu_custom_call.1} parent=1 // pred_region
      _
    $region25: #{tpu_custom_call.1} parent=1 // pred_fallthru
      _
    // Predicated region
    $region26: #{tpu_custom_call.1} parent=1 // pred_check
      _
    $region27: #{tpu_custom_call.1} parent=1 // pred_check_branch
      %83 = sbr.rel (0) target = $region29
    $region28: #{tpu_custom_call.1} parent=1 // pred_region
      _
    $region29: #{tpu_custom_call.1} parent=1 // pred_fallthru
      _
    // Predicated region
    $region30: #{tpu_custom_call.1} parent=1 // pred_check
      _
    $region31: #{tpu_custom_call.1} parent=1 // pred_check_branch
      %85 = sbr.rel (0) target = $region33
    $region32: #{tpu_custom_call.1} parent=1 // pred_region
      %87 = vsyncadd [#allocation9], 0
      %s89 = sshll.u32 %s7, 4
      %s90 = int_to_ptr.hbm [resolvable:$true] %s89
      %s91 = sshll.u32 [#allocation10], 4
      %s92 = int_to_ptr.vmem [resolvable:$true] %s91
      %94 = dma.hbm_to_vmem [thread:$0]  %s90, 64, %s92, [#allocation9]
    $region33: #{tpu_custom_call.1} parent=1 // pred_fallthru
      _
    // Predicated region
    $region34: #{tpu_custom_call.1} parent=1 // pred_check
      _
    $region35: #{tpu_custom_call.1} parent=1 // pred_check_branch
      %96 = sbr.rel (0) target = $region37
    $region36: #{tpu_custom_call.1} parent=1 // pred_region
      _
    $region37: #{tpu_custom_call.1} parent=1 // pred_fallthru
      _
    // Predicated region
    $region38: #{tpu_custom_call.1} parent=1 // pred_check
      _
    $region39: #{tpu_custom_call.1} parent=1 // pred_check_branch
      %98 = sbr.rel (0) target = $region41
    $region40: #{tpu_custom_call.1} parent=1 // pred_region
      %100 = vsyncadd [#allocation12], 0
      %s101 = sshll.u32 %s9, 4
      %s102 = int_to_ptr.hbm [resolvable:$true] %s101
      %s103 = sshll.u32 [#allocation11], 4
      %s104 = int_to_ptr.vmem [resolvable:$true] %s103
      %109 = dma.hbm_to_vmem [thread:$0]  %s102, 2048, %s104, [#allocation12], 128, 128, 8
    $region41: #{tpu_custom_call.1} parent=1 // pred_fallthru
      _
    // Predicated region
    $region42: #{tpu_custom_call.1} parent=1 // pred_check
      _
    $region43: #{tpu_custom_call.1} parent=1 // pred_check_branch
      %111 = sbr.rel (0) target = $region45
    $region44: #{tpu_custom_call.1} parent=1 // pred_region
      _
    $region45: #{tpu_custom_call.1} parent=1 // pred_fallthru
      _
    // Predicated region
    $region46: #{tpu_custom_call.1} parent=1 // pred_check
      _
    $region47: #{tpu_custom_call.1} parent=1 // pred_check_branch
      %113 = sbr.rel (0) target = $region49
    $region48: #{tpu_custom_call.1} parent=1 // pred_region
      %115 = vsyncadd [#allocation12], 0
      %s116 = sshll.u32 %s11, 4
      %s117 = int_to_ptr.hbm [resolvable:$true] %s116
      %s118 = sshll.u32 [#allocation13], 4
      %s119 = int_to_ptr.vmem [resolvable:$true] %s118
      %124 = dma.hbm_to_vmem [thread:$0]  %s117, 2048, %s119, [#allocation12], 128, 128, 8
    $region49: #{tpu_custom_call.1} parent=1 // pred_fallthru
      _
    // Predicated region
    $region50: #{tpu_custom_call.1} parent=1 // pred_check
      _
    $region51: #{tpu_custom_call.1} parent=1 // pred_check_branch
      %126 = sbr.rel (0) target = $region53
    $region52: #{tpu_custom_call.1} parent=1 // pred_region
      %128 = vsyncadd [#allocation15], 0
      %s129 = sshll.u32 %s12, 4
      %s130 = int_to_ptr.hbm [resolvable:$true] %s129
      %s131 = sshll.u32 [#allocation14], 4
      %s132 = int_to_ptr.vmem [resolvable:$true] %s131
      %137 = dma.hbm_to_vmem [thread:$0]  %s130, 2048, %s132, [#allocation15], 128, 128, 8
    $region53: #{tpu_custom_call.1} parent=1 // pred_fallthru
      _
    // Predicated region
    $region54: #{tpu_custom_call.1} parent=1 // pred_check
      _
    $region55: #{tpu_custom_call.1} parent=1 // pred_check_branch
      %139 = sbr.rel (0) target = $region57
    $region56: #{tpu_custom_call.1} parent=1 // pred_region
      %141 = vsyncadd [#allocation15], 0
      %s142 = sshll.u32 %s13, 4
      %s143 = int_to_ptr.hbm [resolvable:$true] %s142
      %s144 = sshll.u32 [#allocation16], 4
      %s145 = int_to_ptr.vmem [resolvable:$true] %s144
      %150 = dma.hbm_to_vmem [thread:$0]  %s143, 2048, %s145, [#allocation15], 128, 128, 8
    $region57: #{tpu_custom_call.1} parent=1 // pred_fallthru
      _
    // Predicated region
    $region58: #{tpu_custom_call.1} parent=1 // pred_check
      _
    $region59: #{tpu_custom_call.1} parent=1 // pred_check_branch
      %152 = sbr.rel (0) target = $region61
    $region60: #{tpu_custom_call.1} parent=1 // pred_region
      _
    $region61: #{tpu_custom_call.1} parent=1 // pred_fallthru
      _
    // Predicated region
    $region62: #{tpu_custom_call.1} parent=1 // pred_check
      _
    $region63: #{tpu_custom_call.1} parent=1 // pred_check_branch
      %154 = sbr.rel (0) target = $region65
    $region64: #{tpu_custom_call.1} parent=1 // pred_region
      %156 = dma.done [#allocation3], 128
    $region65: #{tpu_custom_call.1} parent=1 // pred_fallthru
      _
    // Predicated region
    $region66: #{tpu_custom_call.1} parent=1 // pred_check
      _
    $region67: #{tpu_custom_call.1} parent=1 // pred_check_branch
      %158 = sbr.rel (0) target = $region69
    $region68: #{tpu_custom_call.1} parent=1 // pred_region
      %160 = dma.done [#allocation6], 128
    $region69: #{tpu_custom_call.1} parent=1 // pred_fallthru
      _
    // Predicated region
    $region70: #{tpu_custom_call.1} parent=1 // pred_check
      _
    $region71: #{tpu_custom_call.1} parent=1 // pred_check_branch
      %162 = sbr.rel (0) target = $region73
    $region72: #{tpu_custom_call.1} parent=1 // pred_region
      %164 = dma.done [#allocation6], 256
    $region73: #{tpu_custom_call.1} parent=1 // pred_fallthru
      _
    // Predicated region
    $region74: #{tpu_custom_call.1} parent=1 // pred_check
      _
    $region75: #{tpu_custom_call.1} parent=1 // pred_check_branch
      %166 = sbr.rel (0) target = $region77
    $region76: #{tpu_custom_call.1} parent=1 // pred_region
      %168 = dma.done [#allocation9], 16
    $region77: #{tpu_custom_call.1} parent=1 // pred_fallthru
      _
    // Predicated region
    $region78: #{tpu_custom_call.1} parent=1 // pred_check
      _
    $region79: #{tpu_custom_call.1} parent=1 // pred_check_branch
      %170 = sbr.rel (0) target = $region81
    $region80: #{tpu_custom_call.1} parent=1 // pred_region
      %172 = dma.done [#allocation9], 64
    $region81: #{tpu_custom_call.1} parent=1 // pred_fallthru
      _
    // Predicated region
    $region82: #{tpu_custom_call.1} parent=1 // pred_check
      _
    $region83: #{tpu_custom_call.1} parent=1 // pred_check_branch
      %174 = sbr.rel (0) target = $region85
    $region84: #{tpu_custom_call.1} parent=1 // pred_region
      %176 = dma.done [#allocation12], 2048
    $region85: #{tpu_custom_call.1} parent=1 // pred_fallthru
      _
    // Predicated region
    $region86: #{tpu_custom_call.1} parent=1 // pred_check
      _
    $region87: #{tpu_custom_call.1} parent=1 // pred_check_branch
      %178 = sbr.rel (0) target = $region89
    $region88: #{tpu_custom_call.1} parent=1 // pred_region
      %180 = dma.done [#allocation12], 2048
    $region89: #{tpu_custom_call.1} parent=1 // pred_fallthru
      _
    // Predicated region
    $region90: #{tpu_custom_call.1} parent=1 // pred_check
      _
    $region91: #{tpu_custom_call.1} parent=1 // pred_check_branch
      %182 = sbr.rel (0) target = $region93
    $region92: #{tpu_custom_call.1} parent=1 // pred_region
      %184 = dma.done [#allocation15], 2048
    $region93: #{tpu_custom_call.1} parent=1 // pred_fallthru
      _
    // Predicated region
    $region94: #{tpu_custom_call.1} parent=1 // pred_check
      _
    $region95: #{tpu_custom_call.1} parent=1 // pred_check_branch
      %186 = sbr.rel (0) target = $region97
    $region96: #{tpu_custom_call.1} parent=1 // pred_region
      %188 = dma.done [#allocation15], 2048
    $region97: #{tpu_custom_call.1} parent=1 // pred_fallthru
      _
    %v189 = vld [vmem:[#allocation2] sm:$0xff]
    %v190 = vld [vmem:[#allocation7] sm:$0xff]
    %v191 = vld [vmem:[#allocation7 + $0x8] sm:$0xff]
    %v192 = vld [vmem:[#allocation8] sm:$0x1]
    %v194 = vperm.slane %v192, 0
    %vm196 = vcmask 130048
    %v198 = vsel %vm196, %v189, 0
    %200 = vmatpush.msra.mxu0 0.0
    %201 = vmatpush.msra.mxu0 0.0
    %202 = vmatpush.msra.mxu0 0.0
    %203 = vmatpush.msra.mxu0 0.0
    %204 = vmatpush.msra.mxu0 0.0
    %205 = vmatpush.msra.mxu0 0.0
    %206 = vmatpush.msra.mxu0 0.0
    %207 = vmatpush.msra.mxu0 0.0
    %208 = vmatpush.msra.mxu0 0.0
    %209 = vmatpush.msra.mxu0 0.0
    %210 = vmatpush.msra.mxu0 0.0
    %211 = vmatpush.msra.mxu0 0.0
    %212 = vmatpush.msra.mxu0 0.0
    %213 = vmatpush.msra.mxu0 0.0
    %214 = vmatpush.msra.mxu0 %v191
    %215 = vmatpush.msra.mxu0 %v190
    %216 = vmatmul.f32.gmra.mxu0 %v198
    %v217 = vpop.f32.mrf.mxu0
    %v218 = vadd.f32 %v194, %v217
    %219 = vdwg.mxu0
    %v220 = vld [vmem:[#allocation5] sm:$0xff]
    %v221 = vld [vmem:[%s5] sm:$0xff]
    %v222 = vld [vmem:[%s5 + $0x8] sm:$0xf]
    %v223 = vld [vmem:[%s6] sm:$0x1]
    %v225 = vperm.slane %v223, 0
    %vm227 = vcmask 97280
    %v229 = vsel %vm227, %v220, 0
    %vm231 = vcmask 1043456
    %v233 = vsel %vm231, %v222, 0
    %235 = vmatpush.msra.mxu0 0.0
    %236 = vmatpush.msra.mxu0 0.0
    %237 = vmatpush.msra.mxu0 0.0
    %238 = vmatpush.msra.mxu0 0.0
    %239 = vmatpush.msra.mxu0 0.0
    %240 = vmatpush.msra.mxu0 0.0
    %241 = vmatpush.msra.mxu0 0.0
    %242 = vmatpush.msra.mxu0 0.0
    %243 = vmatpush.msra.mxu0 0.0
    %244 = vmatpush.msra.mxu0 0.0
    %245 = vmatpush.msra.mxu0 0.0
    %246 = vmatpush.msra.mxu0 0.0
    %247 = vmatpush.msra.mxu0 0.0
    %248 = vmatpush.msra.mxu0 0.0
    %249 = vmatpush.msra.mxu0 %v233
    %250 = vmatpush.msra.mxu0 %v221
    %251 = vmatmul.f32.gmra.mxu0 %v229
    %v252 = vpop.f32.mrf.mxu0
    %v253 = vadd.f32 %v225, %v252
    %254 = vdwg.mxu0
    %v255 = vld [vmem:[%s2] sm:$0xff]
    %v256 = vld [vmem:[#allocation10] sm:$0xf]
    %v257 = vld [vmem:[%s8] sm:$0x1]
    %v259 = vperm.slane %v257, 0
    %vm261 = vcmask 31744
    %v263 = vsel %vm261, %v255, 0
    %v266 = vsel %vm231, %v256, 0
    %268 = vmatpush.msra.mxu0 0.0
    %269 = vmatpush.msra.mxu0 0.0
    %270 = vmatpush.msra.mxu0 0.0
    %271 = vmatpush.msra.mxu0 0.0
    %272 = vmatpush.msra.mxu0 0.0
    %273 = vmatpush.msra.mxu0 0.0
    %274 = vmatpush.msra.mxu0 0.0
    %275 = vmatpush.msra.mxu0 0.0
    %276 = vmatpush.msra.mxu0 0.0
    %277 = vmatpush.msra.mxu0 0.0
    %278 = vmatpush.msra.mxu0 0.0
    %279 = vmatpush.msra.mxu0 0.0
    %280 = vmatpush.msra.mxu0 0.0
    %281 = vmatpush.msra.mxu0 0.0
    %282 = vmatpush.msra.mxu0 0.0
    %283 = vmatpush.msra.mxu0 %v266
    %284 = vmatmul.f32.gmra.mxu0 %v263
    %v285 = vpop.f32.mrf.mxu0
    %v286 = vadd.f32 %v259, %v285
    %287 = vdwg.mxu0
    %288 = vst [vmem:[#allocation18] sm:$0xff] %v218
    %289 = vst [vmem:[#allocation20] sm:$0xff] %v253
    %v290 = vld [vmem:[#allocation11] sm:$0xff]
    %v291 = vld [vmem:[#allocation11 + $0x8] sm:$0xff]
    %v292 = vld [vmem:[#allocation11 + $0x10] sm:$0xff]
    %v293 = vld [vmem:[#allocation11 + $0x18] sm:$0xff]
    %v294 = vld [vmem:[#allocation11 + $0x20] sm:$0xff]
    %v295 = vld [vmem:[#allocation11 + $0x28] sm:$0xff]
    %v296 = vld [vmem:[#allocation11 + $0x30] sm:$0xff]
    %v297 = vld [vmem:[#allocation11 + $0x38] sm:$0xff]
    %v298 = vld [vmem:[#allocation11 + $0x40] sm:$0xff]
    %v299 = vld [vmem:[#allocation11 + $0x48] sm:$0xff]
    %v300 = vld [vmem:[#allocation11 + $0x50] sm:$0xff]
    %v301 = vld [vmem:[#allocation11 + $0x58] sm:$0xff]
    %v302 = vld [vmem:[#allocation11 + $0x60] sm:$0xff]
    %v303 = vld [vmem:[#allocation11 + $0x68] sm:$0xff]
    %v304 = vld [vmem:[#allocation11 + $0x70] sm:$0xff]
    %v305 = vld [vmem:[#allocation11 + $0x78] sm:$0xff]
    %v306 = vld [vmem:[%s10] sm:$0x1]
    %v308 = vperm.slane %v306, 0
    %310 = vmatpush.msra.mxu0 %v305
    %311 = vmatpush.msra.mxu0 %v304
    %312 = vmatpush.msra.mxu0 %v303
    %313 = vmatpush.msra.mxu0 %v302
    %314 = vmatpush.msra.mxu0 %v301
    %315 = vmatpush.msra.mxu0 %v300
    %316 = vmatpush.msra.mxu0 %v299
    %317 = vmatpush.msra.mxu0 %v298
    %318 = vmatpush.msra.mxu0 %v297
    %319 = vmatpush.msra.mxu0 %v296
    %320 = vmatpush.msra.mxu0 %v295
    %321 = vmatpush.msra.mxu0 %v294
    %322 = vmatpush.msra.mxu0 %v293
    %323 = vmatpush.msra.mxu0 %v292
    %324 = vmatpush.msra.mxu0 %v291
    %325 = vmatpush.msra.mxu0 %v290
    %326 = vmatmul.f32.gmra.mxu0 %v286
    %v327 = vpop.f32.mrf.mxu0
    %v328 = vadd.f32 %v308, %v327
    %329 = vdwg.mxu0
    %330 = vst [vmem:[#allocation21] sm:$0xff] %v328
    %v331 = vld [vmem:[#allocation13] sm:$0xff]
    %v332 = vld [vmem:[#allocation13 + $0x8] sm:$0xff]
    %v333 = vld [vmem:[#allocation13 + $0x10] sm:$0xff]
    %v334 = vld [vmem:[#allocation13 + $0x18] sm:$0xff]
    %v335 = vld [vmem:[#allocation13 + $0x20] sm:$0xff]
    %v336 = vld [vmem:[#allocation13 + $0x28] sm:$0xff]
    %v337 = vld [vmem:[#allocation13 + $0x30] sm:$0xff]
    %v338 = vld [vmem:[#allocation13 + $0x38] sm:$0xff]
    %v339 = vld [vmem:[#allocation13 + $0x40] sm:$0xff]
    %v340 = vld [vmem:[#allocation13 + $0x48] sm:$0xff]
    %v341 = vld [vmem:[#allocation13 + $0x50] sm:$0xff]
    %v342 = vld [vmem:[#allocation13 + $0x58] sm:$0xff]
    %v343 = vld [vmem:[#allocation13 + $0x60] sm:$0xff]
    %v344 = vld [vmem:[#allocation13 + $0x68] sm:$0xff]
    %v345 = vld [vmem:[#allocation13 + $0x70] sm:$0xff]
    %v346 = vld [vmem:[#allocation13 + $0x78] sm:$0xff]
    %v347 = vld [vmem:[#allocation14] sm:$0xff]
    %v348 = vld [vmem:[#allocation14 + $0x8] sm:$0xff]
    %v349 = vld [vmem:[#allocation14 + $0x10] sm:$0xff]
    %v350 = vld [vmem:[#allocation14 + $0x18] sm:$0xff]
    %v351 = vld [vmem:[#allocation14 + $0x20] sm:$0xff]
    %v352 = vld [vmem:[#allocation14 + $0x28] sm:$0xff]
    %v353 = vld [vmem:[#allocation14 + $0x30] sm:$0xff]
    %v354 = vld [vmem:[#allocation14 + $0x38] sm:$0xff]
    %v355 = vld [vmem:[#allocation14 + $0x40] sm:$0xff]
    %v356 = vld [vmem:[#allocation14 + $0x48] sm:$0xff]
    %v357 = vld [vmem:[#allocation14 + $0x50] sm:$0xff]
    %v358 = vld [vmem:[#allocation14 + $0x58] sm:$0xff]
    %v359 = vld [vmem:[#allocation14 + $0x60] sm:$0xff]
    %v360 = vld [vmem:[#allocation14 + $0x68] sm:$0xff]
    %v361 = vld [vmem:[#allocation14 + $0x70] sm:$0xff]
    %v362 = vld [vmem:[#allocation14 + $0x78] sm:$0xff]
    %363 = vmatpush.msra.mxu0 %v362
    %364 = vmatpush.msra.mxu0 %v361
    %365 = vmatpush.msra.mxu0 %v360
    %366 = vmatpush.msra.mxu0 %v359
    %367 = vmatpush.msra.mxu0 %v358
    %368 = vmatpush.msra.mxu0 %v357
    %369 = vmatpush.msra.mxu0 %v356
    %370 = vmatpush.msra.mxu0 %v355
    %371 = vmatpush.msra.mxu0 %v354
    %372 = vmatpush.msra.mxu0 %v353
    %373 = vmatpush.msra.mxu0 %v352
    %374 = vmatpush.msra.mxu0 %v351
    %375 = vmatpush.msra.mxu0 %v350
    %376 = vmatpush.msra.mxu0 %v349
    %377 = vmatpush.msra.mxu0 %v348
    %378 = vmatpush.msra.mxu0 %v347
    %379 = vmatmul.f32.gmra.mxu0 %v253
    %v380 = vpop.f32.mrf.mxu0
    %v381 = vadd.f32 0.0, %v380
    %382 = vdwg.mxu0
    %383 = vmatpush.msra.mxu0 %v346
    %384 = vmatpush.msra.mxu0 %v345
    %385 = vmatpush.msra.mxu0 %v344
    %386 = vmatpush.msra.mxu0 %v343
    %387 = vmatpush.msra.mxu0 %v342
    %388 = vmatpush.msra.mxu0 %v341
    %389 = vmatpush.msra.mxu0 %v340
    %390 = vmatpush.msra.mxu0 %v339
    %391 = vmatpush.msra.mxu0 %v338
    %392 = vmatpush.msra.mxu0 %v337
    %393 = vmatpush.msra.mxu0 %v336
    %394 = vmatpush.msra.mxu0 %v335
    %395 = vmatpush.msra.mxu0 %v334
    %396 = vmatpush.msra.mxu0 %v333
    %397 = vmatpush.msra.mxu0 %v332
    %398 = vmatpush.msra.mxu0 %v331
    %399 = vmatmul.f32.gmra.mxu0 %v218
    %v400 = vpop.f32.mrf.mxu0
    %v401 = vadd.f32 %v381, %v400
    %402 = vdwg.mxu0
    %v403 = vld [vmem:[#allocation16] sm:$0xff]
    %v404 = vld [vmem:[#allocation16 + $0x8] sm:$0xff]
    %v405 = vld [vmem:[#allocation16 + $0x10] sm:$0xff]
    %v406 = vld [vmem:[#allocation16 + $0x18] sm:$0xff]
    %v407 = vld [vmem:[#allocation16 + $0x20] sm:$0xff]
    %v408 = vld [vmem:[#allocation16 + $0x28] sm:$0xff]
    %v409 = vld [vmem:[#allocation16 + $0x30] sm:$0xff]
    %v410 = vld [vmem:[#allocation16 + $0x38] sm:$0xff]
    %v411 = vld [vmem:[#allocation16 + $0x40] sm:$0xff]
    %v412 = vld [vmem:[#allocation16 + $0x48] sm:$0xff]
    %v413 = vld [vmem:[#allocation16 + $0x50] sm:$0xff]
    %v414 = vld [vmem:[#allocation16 + $0x58] sm:$0xff]
    %v415 = vld [vmem:[#allocation16 + $0x60] sm:$0xff]
    %v416 = vld [vmem:[#allocation16 + $0x68] sm:$0xff]
    %v417 = vld [vmem:[#allocation16 + $0x70] sm:$0xff]
    %v418 = vld [vmem:[#allocation16 + $0x78] sm:$0xff]
    %419 = vmatpush.msra.mxu0 %v418
    %420 = vmatpush.msra.mxu0 %v417
    %421 = vmatpush.msra.mxu0 %v416
    %422 = vmatpush.msra.mxu0 %v415
    %423 = vmatpush.msra.mxu0 %v414
    %424 = vmatpush.msra.mxu0 %v413
    %425 = vmatpush.msra.mxu0 %v412
    %426 = vmatpush.msra.mxu0 %v411
    %427 = vmatpush.msra.mxu0 %v410
    %428 = vmatpush.msra.mxu0 %v409
    %429 = vmatpush.msra.mxu0 %v408
    %430 = vmatpush.msra.mxu0 %v407
    %431 = vmatpush.msra.mxu0 %v406
    %432 = vmatpush.msra.mxu0 %v405
    %433 = vmatpush.msra.mxu0 %v404
    %434 = vmatpush.msra.mxu0 %v403
    %435 = vmatmul.f32.gmra.mxu0 %v286
    %v436 = vpop.f32.mrf.mxu0
    %v437 = vadd.f32 0.0, %v436
    %438 = vdwg.mxu0
    %v439 = vadd.f32 %v401, %v437
    %v440 = vld [vmem:[%s14] sm:$0x1]
    %v442 = vperm.slane %v440, 0
    %v444 = vadd.f32 %v439, %v442
    %v445 = vxor.u32 %v444, 2147483648
    %v446 = vmul.f32 %v445, 1.442695
    %v447 = vpow.pop %v446
    %v448 = vadd.f32 %v447, 1.0
    %v449 = vrcp.pop %v448
    %v450 = vmul.f32 %v448, %v449
    %v451 = vsub.f32 1.0, %v450
    %v452 = vmul.f32 %v449, %v451
    %v453 = vadd.f32 %v449, %v452
    %vm454 = vweird.f32 %v448
    %vm455 = vweird.f32 %v449
    %vm456 = vmor %vm454, %vm455
    %v457 = vsel %vm456, %v449, %v453
    %v458 = vand.u32 2147483647, %v448
    %vm459 = vcmp.eq.f32.partialorder %v458, 8.507059e+37
    %v460 = vand.u32 %v448, 2147483648
    %v461 = vor.u32 1.1754944e-38, %v460
    %v462 = vsel %vm459, %v461, %v457
    %v463 = vmul.f32 1.0, %v462
    %464 = vst [vmem:[#allocation17] sm:$0xff] %v463
    // Predicated region
    $region98: #{tpu_custom_call.1} parent=1 // pred_check
      _
    $region99: #{tpu_custom_call.1} parent=1 // pred_check_branch
      %466 = sbr.rel (0) target = $region101
    $region100: #{tpu_custom_call.1} parent=1 // pred_region
      %468 = vsyncadd [#allocation4], 0
      %s470 = sshll.u32 [#allocation17], 4
      %s471 = int_to_ptr.vmem [resolvable:$true] %s470
      %s472 = sshll.u32 %s15, 4
      %s473 = int_to_ptr.hbm [resolvable:$true] %s472
      %475 = dma.vmem_to_hbm [thread:$0]  %s471, 128, %s473, [#allocation4]
    $region101: #{tpu_custom_call.1} parent=1 // pred_fallthru
      _
    // Predicated region
    $region102: #{tpu_custom_call.1} parent=1 // pred_check
      _
    $region103: #{tpu_custom_call.1} parent=1 // pred_check_branch
      %477 = sbr.rel (0) target = $region105
    $region104: #{tpu_custom_call.1} parent=1 // pred_region
      %479 = vsyncadd [#allocation19], 0
      %s481 = sshll.u32 [#allocation18], 4
      %s482 = int_to_ptr.vmem [resolvable:$true] %s481
      %s483 = sshll.u32 %s16, 4
      %s484 = int_to_ptr.hbm [resolvable:$true] %s483
      %486 = dma.vmem_to_hbm [thread:$0]  %s482, 128, %s484, [#allocation19]
    $region105: #{tpu_custom_call.1} parent=1 // pred_fallthru
      _
    // Predicated region
    $region106: #{tpu_custom_call.1} parent=1 // pred_check
      _
    $region107: #{tpu_custom_call.1} parent=1 // pred_check_branch
      %488 = sbr.rel (0) target = $region109
    $region108: #{tpu_custom_call.1} parent=1 // pred_region
      %490 = vsyncadd [#allocation19], 0
      %s492 = sshll.u32 [#allocation20], 4
      %s493 = int_to_ptr.vmem [resolvable:$true] %s492
      %s494 = sshll.u32 %s17, 4
      %s495 = int_to_ptr.hbm [resolvable:$true] %s494
      %497 = dma.vmem_to_hbm [thread:$0]  %s493, 128, %s495, [#allocation19]
    $region109: #{tpu_custom_call.1} parent=1 // pred_fallthru
      _
    // Predicated region
    $region110: #{tpu_custom_call.1} parent=1 // pred_check
      _
    $region111: #{tpu_custom_call.1} parent=1 // pred_check_branch
      %499 = sbr.rel (0) target = $region113
    $region112: #{tpu_custom_call.1} parent=1 // pred_region
      %501 = vsyncadd [#allocation22], 0
      %s503 = sshll.u32 [#allocation21], 4
      %s504 = int_to_ptr.vmem [resolvable:$true] %s503
      %s505 = sshll.u32 %s18, 4
      %s506 = int_to_ptr.hbm [resolvable:$true] %s505
      %508 = dma.vmem_to_hbm [thread:$0]  %s504, 128, %s506, [#allocation22]
    $region113: #{tpu_custom_call.1} parent=1 // pred_fallthru
      _
    // Predicated region
    $region114: #{tpu_custom_call.1} parent=1 // pred_check
      _
    $region115: #{tpu_custom_call.1} parent=1 // pred_check_branch
      %510 = sbr.rel (0) target = $region117
    $region116: #{tpu_custom_call.1} parent=1 // pred_region
      %512 = dma.done [#allocation4], 128
    $region117: #{tpu_custom_call.1} parent=1 // pred_fallthru
      _
    // Predicated region
    $region118: #{tpu_custom_call.1} parent=1 // pred_check
      _
    $region119: #{tpu_custom_call.1} parent=1 // pred_check_branch
      %514 = sbr.rel (0) target = $region121
    $region120: #{tpu_custom_call.1} parent=1 // pred_region
      %516 = dma.done [#allocation19], 128
    $region121: #{tpu_custom_call.1} parent=1 // pred_fallthru
      _
    // Predicated region
    $region122: #{tpu_custom_call.1} parent=1 // pred_check
      _
    $region123: #{tpu_custom_call.1} parent=1 // pred_check_branch
      %518 = sbr.rel (0) target = $region125
    $region124: #{tpu_custom_call.1} parent=1 // pred_region
      %520 = dma.done [#allocation19], 128
    $region125: #{tpu_custom_call.1} parent=1 // pred_fallthru
      _
    // Predicated region
    $region126: #{tpu_custom_call.1} parent=1 // pred_check
      _
    $region127: #{tpu_custom_call.1} parent=1 // pred_check_branch
      %522 = sbr.rel (0) target = $region129
    $region128: #{tpu_custom_call.1} parent=1 // pred_region
      %524 = dma.done [#allocation22], 128
    $region129: #{tpu_custom_call.1} parent=1 // pred_fallthru
      _
    %525 = vsyncpa [#allocation3], 1
    %526 = vsyncpa [#allocation6], 1
    %527 = vsyncpa [#allocation9], 1
    %528 = vsyncpa [#allocation12], 1
    %529 = vsyncpa [#allocation15], 1
    %530 = vsyncpa [#allocation4], 1
    %531 = vsyncpa [#allocation19], 1
    %532 = vsyncpa [#allocation22], 1

</llo_original>
